<compile_context>
chip_gen: v7x
topology: tpu7x:2x2x1
jax: 0.10.0
libtpu: 0.0.40
codegen_flags: <defaults>
</compile_context>

<pallas_src>
import functools

import jax
import jax.numpy as jnp
from jax import lax
from jax.experimental import pallas as pl
from jax.experimental.pallas import tpu as pltpu


def _round_up(x, m):
    return ((x + m - 1) // m) * m


def _update_article_kernel(x_ref, mask_ref, w_ref, b_ref, out_ref, *,
                           art, fold_mixed_epilogue):
    """One (batch row, seq-tile) grid step.

    x_ref:    (1, ts, E)  embeds tile
    mask_ref: (1, ts, 1)  mask tile (f32)
    w_ref:    (E, N)      linear weight, transposed, zero-padded to N lanes
    b_ref:    (1, N)      bias, zero-padded
    out_ref:  (1, 1, N)   per-batch accumulator / result (f32):
                          cols 0..A-1 = sum_s contrib*w   (or article if the
                          mixed epilogue is folded), col A = sum_s w (or ow)
    """
    s = pl.program_id(1)

    @pl.when(s == 0)
    def _init():
        out_ref[...] = jnp.zeros_like(out_ref)

    x = x_ref[0]                                   # [ts, E]
    m = mask_ref[0]                                # [ts, 1] f32

    # Linear layer (dropout is identity at inference).
    # TODO(synk): training-time dropout from linear_layer is not implemented.
    raw = jnp.dot(x, w_ref[...], preferred_element_type=jnp.float32)
    raw = raw + b_ref[...]                         # [ts, N] f32 (unmasked)

    # Per-token weight = relu(masked last real column).
    weights = jnp.maximum(raw[:, art:art + 1] * m, 0.0)   # [ts, 1]
    # Fractional-mask-safe: (raw*mask)*weights == raw*(mask*weights).
    wm = weights * m                                        # [ts, 1]

    col = lax.broadcasted_iota(jnp.int32, raw.shape, 1)
    weighted = jnp.where(col == art, weights, raw * wm)    # [ts, N]

    # Sublane (XLU) reduction over the seq tile, accumulate per batch row.
    out_ref[...] += jnp.sum(weighted, axis=0, keepdims=True)[None]

    if fold_mixed_epilogue:
        @pl.when(s == pl.num_programs(1) - 1)
        def _finalize():
            sums = out_ref[...]                              # (1, 1, N)
            ow = sums[:, :, art:art + 1] + 1e-05             # (1, 1, 1)
            article = (sums + 1e-08) / ow                    # (1, 1, N)
            col3 = lax.broadcasted_iota(jnp.int32, sums.shape, 2)
            out_ref[...] = jnp.where(col3 == art, ow, article)


def prepare_update_article_params(weight_t, bias, param_dtype=None):
    """Pad the linear params once, at parameter-load time.

    weight_t: [E, A+1] (linear weight, pre-transposed)
    bias:     [A+1]
    Returns (w_pad [E, N], b_pad [1, N], article_size A), N = 128-padded A+1.
    """
    _, ap1 = weight_t.shape
    n = _round_up(ap1, 128)
    dt = param_dtype if param_dtype is not None else weight_t.dtype
    w_pad = jnp.pad(weight_t, ((0, 0), (0, n - ap1))).astype(dt)
    b_pad = jnp.pad(bias.reshape(1, ap1),
                    ((0, 0), (0, n - ap1))).astype(jnp.float32)
    return w_pad, b_pad, ap1 - 1


def _per_batch_sums_call(embeds, mask, w_pad, b_pad, art, fold_mixed):
    """Runs the kernel; returns [B, N] f32 (sums, or article/ow if folded)."""
    B, S, E = embeds.shape
    N = w_pad.shape[1]

    # Seq tile: multiple of 8 sublanes, capped at 512 rows so double-buffered
    # tiles stay well inside v7x's 32 MiB scoped VMEM while reaching ~85% of
    # the HBM roofline at production S.
    ts = min(512, _round_up(S, 8))
    s_pad = _round_up(S, ts)
    if s_pad != S:
        embeds = jnp.pad(embeds, ((0, 0), (0, s_pad - S), (0, 0)))
        mask = jnp.pad(mask, ((0, 0), (0, s_pad - S), (0, 0)))
    mask = mask.astype(jnp.float32)

    grid = (B, s_pad // ts)

    # Logical (unpadded) cost estimate so XLA can overlap this kernel
    # correctly instead of treating the padded N=128 matmul as real work.
    flops = 2 * B * S * E * (art + 1) + 6 * B * S * (art + 1)
    bytes_accessed = (embeds.size * embeds.dtype.itemsize
                      + B * S * 4                          # mask
                      + E * (art + 1) * w_pad.dtype.itemsize
                      + (art + 1) * 4
                      + B * (art + 1) * 4)

    kernel = functools.partial(_update_article_kernel, art=art,
                               fold_mixed_epilogue=fold_mixed)
    out = pl.pallas_call(
        kernel,
        out_shape=jax.ShapeDtypeStruct((B, 1, N), jnp.float32),
        grid_spec=pltpu.PrefetchScalarGridSpec(
            num_scalar_prefetch=0,
            grid=grid,
            in_specs=[
                pl.BlockSpec((1, ts, E), lambda b, s: (b, s, 0)),
                pl.BlockSpec((1, ts, 1), lambda b, s: (b, s, 0)),
                pl.BlockSpec((E, N), lambda b, s: (0, 0)),
                pl.BlockSpec((1, N), lambda b, s: (0, 0)),
            ],
            out_specs=pl.BlockSpec((1, 1, N), lambda b, s: (b, 0, 0)),
        ),
        compiler_params=pltpu.CompilerParams(
            dimension_semantics=("parallel", "arbitrary")),
        cost_estimate=pl.CostEstimate(flops=flops, transcendentals=0,
                                      bytes_accessed=bytes_accessed),
    )(embeds, mask, w_pad, b_pad)
    return out[:, 0, :]          # [B, N]


def update_article_forward(embeds, previous, previous_weight, mask,
                           mixed_article, params):
    """JAX/Pallas equivalent of update_article.forward.

    embeds:          [B, S, E]
    previous:        [B, A] or None
    previous_weight: [1]
    mask:            [B, S, 1]
    mixed_article:   python bool (static)
    params:          output of prepare_update_article_params (padded once)
    """
    w_pad, b_pad, art = params
    B = embeds.shape[0]
    out = _per_batch_sums_call(embeds, mask, w_pad, b_pad, art,
                               fold_mixed=bool(mixed_article))
    if mixed_article:
        # Epilogue already folded into the kernel finalize step.
        return out[:, :art], out[:, art:art + 1]

    # Non-mixed: cross-batch reduction + `previous` mixing is inherently
    # cross-batch / scalar, stays as a few tiny XLA ops on [B, A] tensors.
    sumc = out[:, :art]
    sumw = out[:, art:art + 1]
    ow = jnp.sum(sumw) + 1e-05
    article = (jnp.sum(sumc, axis=0) + 1e-06) / ow
    article = jnp.broadcast_to(article[None, :], (B, art))
    if previous is not None:
        article = (article * ow + previous * previous_weight) / (
            ow + previous_weight)
    return article, ow


def _reference_forward(embeds, previous, previous_weight, mask,
                       mixed_article, weight_t, bias):
    """Pure-JAX reference mirroring the PyTorch module."""
    contribution = jnp.einsum("bse,ea->bsa", embeds, weight_t) + bias
    contribution = contribution * mask
    weights = jnp.maximum(contribution[:, :, -1:], 0.0)
    contribution = contribution[:, :, :-1] * weights
    if mixed_article:
        ow = jnp.sum(weights, axis=1) + 1e-05
        article = (jnp.sum(contribution, axis=1) + 1e-08) / ow
    else:
        ow = jnp.sum(weights) + 1e-05
        article = (jnp.sum(jnp.sum(contribution, axis=0), axis=0) + 1e-06) / ow
        article = jnp.broadcast_to(article[None, :],
                                   (embeds.shape[0], article.shape[0]))
        if previous is not None:
            article = (article * ow + previous * previous_weight) / (
                ow + previous_weight)
    return article, ow


if __name__ == "__main__":
    # Small deterministic shapes consistent with the module.
    B, S, E, A = 2, 8, 32, 16          # embed_size=32, article_size=16
    init_std = 0.02                    # ('normal', init_std) style init

    key = jax.random.PRNGKey(0)
    k_emb, k_prev, k_w, k_mask = jax.random.split(key, 4)

    embeds = jax.random.normal(k_emb, (B, S, E), dtype=jnp.float32)
    previous = jax.random.normal(k_prev, (B, A), dtype=jnp.float32)
    previous_weight = jnp.array([0.5], dtype=jnp.float32)
    mask = (jax.random.uniform(k_mask, (B, S, 1)) > 0.25).astype(jnp.float32)

    # Parameters of linear_layer(embed_size, article_size+1): weight [A+1, E]
    # (stored pre-transposed as [E, A+1]), bias constant 0.1.
    weight_t = init_std * jax.random.normal(k_w, (E, A + 1), dtype=jnp.float32)
    bias = jnp.full((A + 1,), 0.1, dtype=jnp.float32)

    # Pad/cast the params ONCE (parameter-load time), reuse for every forward.
    params = prepare_update_article_params(weight_t, bias)

    # mixed_article = True branch (epilogue folded into the kernel).
    art_t, ow_t = update_article_forward(
        embeds, previous, previous_weight, mask, True, params)
    # mixed_article = False branch (uses `previous`).
    art_f, ow_f = update_article_forward(
        embeds, previous, previous_weight, mask, False, params)
    jax.block_until_ready((art_t, ow_t, art_f, ow_f))

    # Correctness check against the pure-JAX reference.
    ref_t = _reference_forward(embeds, previous, previous_weight, mask,
                               True, weight_t, bias)
    ref_f = _reference_forward(embeds, previous, previous_weight, mask,
                               False, weight_t, bias)
    assert jnp.allclose(art_t, ref_t[0], atol=1e-5, rtol=1e-5)
    assert jnp.allclose(ow_t, ref_t[1], atol=1e-5, rtol=1e-5)
    assert jnp.allclose(art_f, ref_f[0], atol=1e-5, rtol=1e-5)
    assert jnp.allclose(ow_f, ref_f[1], atol=1e-5, rtol=1e-5)

    print("KERNEL_OK")
</pallas_src>

<mosaic_0001>
module attributes {stable_mosaic.version = 11 : i64} {
  func.func @_update_article_kernel(%arg0: i32, %arg1: i32, %arg2: memref<1x8x32xf32, #tpu.memory_space<vmem>>, %arg3: memref<1x8x1xf32, #tpu.memory_space<vmem>>, %arg4: memref<32x128xf32, #tpu.memory_space<vmem>>, %arg5: memref<1x128xf32, #tpu.memory_space<vmem>>, %arg6: memref<1x1x128xf32, #tpu.memory_space<vmem>>) attributes {dimension_semantics = [#tpu.dimension_semantics<parallel>, #tpu.dimension_semantics<arbitrary>], iteration_bounds = array<i64: 2, 1>, scalar_prefetch = 0 : i64, scratch_operands = 0 : i64, tpu.core_type = #tpu.core_type<tc>, window_params = [{transform_indices = @transform_0, window_bounds = array<i64: 1, 8, 32>}, {transform_indices = @transform_1, window_bounds = array<i64: 1, 8, 1>}, {pipeline_mode = #tpu.pipeline_mode<synchronous>, transform_indices = @transform_2, window_bounds = array<i64: 32, 128>}, {pipeline_mode = #tpu.pipeline_mode<synchronous>, transform_indices = @transform_3, window_bounds = array<i64: 1, 128>}, {transform_indices = @transform_4, window_bounds = array<i64: 1, 1, 128>}]} {
    %c0_i32 = arith.constant 0 : i32
    %0 = arith.cmpi eq, %arg1, %c0_i32 : i32
    %1 = arith.extui %0 : i1 to i32
    %c0_i32_0 = arith.constant 0 : i32
    %2 = arith.cmpi ne, %1, %c0_i32_0 : i32
    scf.if %2 {
      %cst_20 = arith.constant 0.000000e+00 : f32
      %34 = vector.broadcast %cst_20 : f32 to vector<1x1x128xf32>
      %c0_21 = arith.constant 0 : index
      %c0_22 = arith.constant 0 : index
      %c0_23 = arith.constant 0 : index
      %35 = vector.load %arg6[%c0_21, %c0_22, %c0_23] : memref<1x1x128xf32, #tpu.memory_space<vmem>>, vector<1x1x128xf32>
      tpu.vector_store %arg6[%c0_21, %c0_22, %c0_23], %34 {strides = array<i32>} : memref<1x1x128xf32, #tpu.memory_space<vmem>>, vector<1x1x128xf32>,
    } else {
    }
    %c0 = arith.constant 0 : index
    %c0_1 = arith.constant 0 : index
    %c0_2 = arith.constant 0 : index
    %3 = vector.load %arg2[%c0, %c0_1, %c0_2] : memref<1x8x32xf32, #tpu.memory_space<vmem>>, vector<1x8x32xf32>
    %4 = vector.shape_cast %3 : vector<1x8x32xf32> to vector<8x32xf32>
    %c0_3 = arith.constant 0 : index
    %c0_4 = arith.constant 0 : index
    %c0_5 = arith.constant 0 : index
    %5 = vector.load %arg3[%c0_3, %c0_4, %c0_5] : memref<1x8x1xf32, #tpu.memory_space<vmem>>, vector<1x8x1xf32>
    %6 = vector.shape_cast %5 : vector<1x8x1xf32> to vector<8x1xf32>
    %c0_6 = arith.constant 0 : index
    %c0_7 = arith.constant 0 : index
    %7 = vector.load %arg4[%c0_6, %c0_7] : memref<32x128xf32, #tpu.memory_space<vmem>>, vector<32x128xf32>
    %cst = arith.constant dense<0.000000e+00> : vector<8x128xf32>
    %8 = tpu.matmul %4, %7, %cst {dimension_numbers = #tpu.dot_dimension_numbers<[1], [0], [0], [1], [0, 0, 1, 1], [], []>} : vector<8x32xf32>, vector<32x128xf32>, vector<8x128xf32> -> vector<8x128xf32>
    %c0_8 = arith.constant 0 : index
    %c0_9 = arith.constant 0 : index
    %9 = vector.load %arg5[%c0_8, %c0_9] : memref<1x128xf32, #tpu.memory_space<vmem>>, vector<1x128xf32>
    %10 = vector.broadcast %9 : vector<1x128xf32> to vector<8x128xf32>
    %11 = arith.addf %8, %10 : vector<8x128xf32>
    %12 = vector.extract_strided_slice %11 {offsets = [0, 16], sizes = [8, 1], strides = [1, 1]} : vector<8x128xf32> to vector<8x1xf32>
    %13 = arith.mulf %12, %6 : vector<8x1xf32>
    %cst_10 = arith.constant 0.000000e+00 : f32
    %14 = vector.broadcast %cst_10 : f32 to vector<8x1xf32>
    %15 = arith.maximumf %13, %14 : vector<8x1xf32>
    %16 = arith.mulf %15, %6 : vector<8x1xf32>
    %17 = tpu.iota {dimensions = array<i32: 1>} : vector<8x128xi32>
    %c16_i32 = arith.constant 16 : i32
    %18 = vector.broadcast %c16_i32 : i32 to vector<8x128xi32>
    %19 = arith.cmpi eq, %17, %18 : vector<8x128xi32>
    %20 = vector.broadcast %16 : vector<8x1xf32> to vector<8x128xf32>
    %21 = arith.mulf %11, %20 : vector<8x128xf32>
    %22 = vector.shape_cast %15 : vector<8x1xf32> to vector<8x1xf32>
    %23 = vector.broadcast %22 : vector<8x1xf32> to vector<8x128xf32>
    %24 = arith.select %19, %23, %21 : vector<8x128xi1>, vector<8x128xf32>
    %c0_11 = arith.constant 0 : index
    %c0_12 = arith.constant 0 : index
    %c0_13 = arith.constant 0 : index
    %25 = vector.load %arg6[%c0_11, %c0_12, %c0_13] : memref<1x1x128xf32, #tpu.memory_space<vmem>>, vector<1x1x128xf32>
    %cst_14 = arith.constant dense<0.000000e+00> : vector<128xf32>
    %26 = vector.multi_reduction <add>, %24, %cst_14 [0] : vector<8x128xf32> to vector<128xf32>
    %27 = vector.shape_cast %26 : vector<128xf32> to vector<1x128xf32>
    %28 = vector.shape_cast %27 : vector<1x128xf32> to vector<1x1x128xf32>
    %29 = arith.addf %25, %28 : vector<1x1x128xf32>
    %c0_15 = arith.constant 0 : index
    %c0_16 = arith.constant 0 : index
    %c0_17 = arith.constant 0 : index
    %30 = vector.load %arg6[%c0_15, %c0_16, %c0_17] : memref<1x1x128xf32, #tpu.memory_space<vmem>>, vector<1x1x128xf32>
    tpu.vector_store %arg6[%c0_15, %c0_16, %c0_17], %29 {strides = array<i32>} : memref<1x1x128xf32, #tpu.memory_space<vmem>>, vector<1x1x128xf32>,
    %c0_i32_18 = arith.constant 0 : i32
    %31 = arith.cmpi eq, %arg1, %c0_i32_18 : i32
    %32 = arith.extui %31 : i1 to i32
    %c0_i32_19 = arith.constant 0 : i32
    %33 = arith.cmpi ne, %32, %c0_i32_19 : i32
    scf.if %33 {
      %c0_20 = arith.constant 0 : index
      %c0_21 = arith.constant 0 : index
      %c0_22 = arith.constant 0 : index
      %34 = vector.load %arg6[%c0_20, %c0_21, %c0_22] : memref<1x1x128xf32, #tpu.memory_space<vmem>>, vector<1x1x128xf32>
      %35 = vector.extract_strided_slice %34 {offsets = [0, 0, 16], sizes = [1, 1, 1], strides = [1, 1, 1]} : vector<1x1x128xf32> to vector<1x1x1xf32>
      %cst_23 = arith.constant 9.99999974E-6 : f32
      %36 = vector.broadcast %cst_23 : f32 to vector<1x1x1xf32>
      %37 = arith.addf %35, %36 : vector<1x1x1xf32>
      %cst_24 = arith.constant 9.99999993E-9 : f32
      %38 = vector.broadcast %cst_24 : f32 to vector<1x1x128xf32>
      %39 = arith.addf %34, %38 : vector<1x1x128xf32>
      %40 = vector.broadcast %37 : vector<1x1x1xf32> to vector<1x1x128xf32>
      %41 = arith.divf %39, %40 : vector<1x1x128xf32>
      %42 = tpu.iota {dimensions = array<i32: 2>} : vector<1x1x128xi32>
      %c16_i32_25 = arith.constant 16 : i32
      %43 = vector.broadcast %c16_i32_25 : i32 to vector<1x1x128xi32>
      %44 = arith.cmpi eq, %42, %43 : vector<1x1x128xi32>
      %45 = vector.shape_cast %37 : vector<1x1x1xf32> to vector<1x1x1xf32>
      %46 = vector.broadcast %45 : vector<1x1x1xf32> to vector<1x1x128xf32>
      %47 = arith.select %44, %46, %41 : vector<1x1x128xi1>, vector<1x1x128xf32>
      %c0_26 = arith.constant 0 : index
      %c0_27 = arith.constant 0 : index
      %c0_28 = arith.constant 0 : index
      %48 = vector.load %arg6[%c0_26, %c0_27, %c0_28] : memref<1x1x128xf32, #tpu.memory_space<vmem>>, vector<1x1x128xf32>
      tpu.vector_store %arg6[%c0_26, %c0_27, %c0_28], %47 {strides = array<i32>} : memref<1x1x128xf32, #tpu.memory_space<vmem>>, vector<1x1x128xf32>,
    } else {
    }
    return
  }
  func.func @transform_0(%arg0: i32, %arg1: i32) -> (i32, i32, i32) {
    %c0_i32 = arith.constant 0 : i32
    %c0_i32_0 = arith.constant 0 : i32
    return %arg0, %arg1, %c0_i32 : i32, i32, i32
  }
  func.func @transform_1(%arg0: i32, %arg1: i32) -> (i32, i32, i32) {
    %c0_i32 = arith.constant 0 : i32
    %c0_i32_0 = arith.constant 0 : i32
    return %arg0, %arg1, %c0_i32 : i32, i32, i32
  }
  func.func @transform_2(%arg0: i32, %arg1: i32) -> (i32, i32) {
    %c0_i32 = arith.constant 0 : i32
    %c0_i32_0 = arith.constant 0 : i32
    %c0_i32_1 = arith.constant 0 : i32
    return %c0_i32, %c0_i32_0 : i32, i32
  }
  func.func @transform_3(%arg0: i32, %arg1: i32) -> (i32, i32) {
    %c0_i32 = arith.constant 0 : i32
    %c0_i32_0 = arith.constant 0 : i32
    %c0_i32_1 = arith.constant 0 : i32
    return %c0_i32, %c0_i32_0 : i32, i32
  }
  func.func @transform_4(%arg0: i32, %arg1: i32) -> (i32, i32, i32) {
    %c0_i32 = arith.constant 0 : i32
    %c0_i32_0 = arith.constant 0 : i32
    %c0_i32_1 = arith.constant 0 : i32
    return %arg0, %c0_i32, %c0_i32_0 : i32, i32, i32
  }
}

</mosaic_0001>

<llo_original>
// kernel: tpu_custom_call.1
$region0: #{tpu_custom_call.1}
  #allocation0 [shape = 'u32[]', space=smem, size = 0x4, offset = 0x4, fixed_abs, tag = 'smem constant byte address 0x4 - core index']
  #allocation1 [shape = 'u32[144,128]{1,0:T(1,128)}', space=vmem, size = 0x12000, scoped, tag = 'internal scratch']
  %s0 = inlined_call_operand.vmem [shape: f32[2,8,32], index: 0, kind: input, shape index: {}]
  %s1 = inlined_call_operand.vmem [shape: f32[2,8,1], index: 1, kind: input, shape index: {}]
  %s2 = inlined_call_operand.hbm [shape: f32[32,128], index: 2, kind: input, shape index: {}]
  %s3 = inlined_call_operand.vmem [shape: f32[1,128], index: 3, kind: input, shape index: {}]
  %s4 = inlined_call_operand.hbm [shape: f32[2,1,128], index: 4, kind: output, shape index: {}]
  %s5 = sld [smem:[#allocation0]]
  $region61: #{tpu_custom_call.1} parent=0
    _
  %s7 = ssub.s32 1, %s5
  %s8 = scalar_select 0, %s7, %s5
  $region1: #{tpu_custom_call.1} parent=0
    #allocation2 [shape = 'u8[16384]{0}', space=vmem, size = 0x4000, scoped, tag = 'input window, operand 2, single buffered']
    #allocation3 [shape = 's32[2]{0}', space=sflag, size = 0x8, scoped, tag = 'scoped memory for tpu_custom_call.1']
    #allocation4 [shape = 's32[2]{0}', space=sflag, size = 0x8, scoped, tag = 'scoped memory for tpu_custom_call.1']
    #allocation5 [shape = 'u8[1024]{0}', space=vmem, size = 0x400, scoped, tag = 'output window, operand 0']
    %9 = vsyncpa [#allocation3], 0
    %10 = vsyncpa [#allocation4], 0
    %s11 = scalar_lea.sflag [#allocation4], 1
    %12 = vsyncpa %s11, 0
    loop: start=0, step=1, limit=4
    $region2: #{tpu_custom_call.1} parent=1 // loop_pre_header
      _
    $region3: #{tpu_custom_call.1} parent=1 // loop_header
      %s14 = sphi 0, %s18
      %p15 = scmp.ge.s32.totalorder %s14, 4
      %s21 = sphi 0, %s33
      %s22 = sphi 0, %s29
      %s23 = sphi 0, %s21
      %s24 = sphi 0, %s22
      %s25 = sphi 0, %s23
      %s26 = sphi 0, %s24
      %s38 = sphi 0, %s40
      %s41 = sphi 0, %s38
      %s42 = sphi 0, %s41
      %s58 = sphi 0, %s42
      %s66 = sphi 0, %s68
      %s69 = sphi 0, %s66
      %s70 = sphi 0, %s69
      %s86 = sphi 0, %s70
      %s90 = sphi 0, %s90
      %s92 = sphi 0, %s90
      %s93 = sphi 0, %s92
      %s107 = sphi 0, %s93
      %s111 = sphi 0, %s111
      %s113 = sphi 0, %s111
      %s114 = sphi 0, %s113
      %s128 = sphi 0, %s114
      %s134 = sphi 0, %s136
      %s137 = sphi 0, %s134
      %s138 = sphi 0, %s137
      %s154 = sphi 0, %s138
    $region4: #{tpu_custom_call.1} parent=1 // loop_header_branch
      %17 = sbr.rel (%p15) target = $region8
    $region5: #{tpu_custom_call.1} parent=1 // loop_body
      %s19 = ssub.s32 %s14, 1
      %s20 = ssub.s32 %s14, 2
      %s27 = sadd.s32 1, %s22
      %p28 = scmp.ge.s32.totalorder %s27, 1
      %s29 = scalar_select %p28, 0, %s27
      %s30 = sadd.s32 1, %s21
      %s31 = scalar_select %p28, %s30, %s21
      %p32 = scmp.ge.s32.totalorder %s31, 2
      %s33 = scalar_select %p32, 0, %s31
      %s34 = ssub.s32 %s21, %s33
      %s35 = ssub.s32 %s22, %s29
      %s36 = sor.u32 %s34, %s35
      %p37 = scmp.eq.s32.totalorder %s36, 0
      %s39 = sadd.s32 %s38, 1
      %s40 = scalar_select %p37, %s38, %s39
      %p43 = pneg %p37
      %p44 = scmp.eq.s32.totalorder %s14, 1
      %p45 = por %p43, %p44
      %p46 = scmp.ne.s32.totalorder %s38, %s41
      %p47 = scmp.eq.s32.totalorder %s14, 0
      %p48 = por %p46, %p47
      %p49 = scmp.ne.s32.totalorder %s38, %s41
      %p50 = scmp.eq.s32.totalorder %s19, 1
      %p51 = por %p49, %p50
      %p52 = scmp.ne.s32.totalorder %s41, %s42
      %p53 = scmp.eq.s32.totalorder %s19, 0
      %p54 = por %p52, %p53
      %p55 = scmp.ne.s32.totalorder %s41, %s42
      %p56 = scmp.eq.s32.totalorder %s20, 1
      %p57 = por %p55, %p56
      %p59 = scmp.ne.s32.totalorder %s42, %s58
      %p60 = scmp.eq.s32.totalorder %s20, 0
      %p61 = por %p59, %p60
      %s62 = ssub.s32 %s21, %s33
      %s63 = ssub.s32 %s22, %s29
      %s64 = sor.u32 %s62, %s63
      %p65 = scmp.eq.s32.totalorder %s64, 0
      %s67 = sadd.s32 %s66, 1
      %s68 = scalar_select %p65, %s66, %s67
      %p71 = pneg %p65
      %p72 = scmp.eq.s32.totalorder %s14, 1
      %p73 = por %p71, %p72
      %p74 = scmp.ne.s32.totalorder %s66, %s69
      %p75 = scmp.eq.s32.totalorder %s14, 0
      %p76 = por %p74, %p75
      %p77 = scmp.ne.s32.totalorder %s66, %s69
      %p78 = scmp.eq.s32.totalorder %s19, 1
      %p79 = por %p77, %p78
      %p80 = scmp.ne.s32.totalorder %s69, %s70
      %p81 = scmp.eq.s32.totalorder %s19, 0
      %p82 = por %p80, %p81
      %p83 = scmp.ne.s32.totalorder %s69, %s70
      %p84 = scmp.eq.s32.totalorder %s20, 1
      %p85 = por %p83, %p84
      %p87 = scmp.ne.s32.totalorder %s70, %s86
      %p88 = scmp.eq.s32.totalorder %s20, 0
      %p89 = por %p87, %p88
      %s91 = sadd.s32 %s90, 1
      %p94 = scmp.eq.s32.totalorder %s14, 1
      %p95 = scmp.ne.s32.totalorder %s90, %s92
      %p96 = scmp.eq.s32.totalorder %s14, 0
      %p97 = por %p95, %p96
      %p98 = scmp.ne.s32.totalorder %s90, %s92
      %p99 = scmp.eq.s32.totalorder %s19, 1
      %p100 = por %p98, %p99
      %p101 = scmp.ne.s32.totalorder %s92, %s93
      %p102 = scmp.eq.s32.totalorder %s19, 0
      %p103 = por %p101, %p102
      %p104 = scmp.ne.s32.totalorder %s92, %s93
      %p105 = scmp.eq.s32.totalorder %s20, 1
      %p106 = por %p104, %p105
      %p108 = scmp.ne.s32.totalorder %s93, %s107
      %p109 = scmp.eq.s32.totalorder %s20, 0
      %p110 = por %p108, %p109
      %s112 = sadd.s32 %s111, 1
      %p115 = scmp.eq.s32.totalorder %s14, 1
      %p116 = scmp.ne.s32.totalorder %s111, %s113
      %p117 = scmp.eq.s32.totalorder %s14, 0
      %p118 = por %p116, %p117
      %p119 = scmp.ne.s32.totalorder %s111, %s113
      %p120 = scmp.eq.s32.totalorder %s19, 1
      %p121 = por %p119, %p120
      %p122 = scmp.ne.s32.totalorder %s113, %s114
      %p123 = scmp.eq.s32.totalorder %s19, 0
      %p124 = por %p122, %p123
      %p125 = scmp.ne.s32.totalorder %s113, %s114
      %p126 = scmp.eq.s32.totalorder %s20, 1
      %p127 = por %p125, %p126
      %p129 = scmp.ne.s32.totalorder %s114, %s128
      %p130 = scmp.eq.s32.totalorder %s20, 0
      %p131 = por %p129, %p130
      %s132 = ssub.s32 %s21, %s33
      %p133 = scmp.eq.s32.totalorder %s132, 0
      %s135 = sadd.s32 %s134, 1
      %s136 = scalar_select %p133, %s134, %s135
      %p139 = pneg %p133
      %p140 = scmp.eq.s32.totalorder %s14, 1
      %p141 = por %p139, %p140
      %p142 = scmp.ne.s32.totalorder %s134, %s137
      %p143 = scmp.eq.s32.totalorder %s14, 0
      %p144 = por %p142, %p143
      %p145 = scmp.ne.s32.totalorder %s134, %s137
      %p146 = scmp.eq.s32.totalorder %s19, 1
      %p147 = por %p145, %p146
      %p148 = scmp.ne.s32.totalorder %s137, %s138
      %p149 = scmp.eq.s32.totalorder %s19, 0
      %p150 = por %p148, %p149
      %p151 = scmp.ne.s32.totalorder %s137, %s138
      %p152 = scmp.eq.s32.totalorder %s20, 1
      %p153 = por %p151, %p152
      %p155 = scmp.ne.s32.totalorder %s138, %s154
      %p156 = scmp.eq.s32.totalorder %s20, 0
      %p157 = por %p155, %p156
      %p158 = scmp.le.s32.totalorder 1, %s14
      %p159 = scmp.lt.s32.totalorder %s14, 3
      %p160 = pnand %p158, %p159
      %p161 = pneg %p160
      // Predicated region
      $region9: #{tpu_custom_call.1} parent=5 // pred_check
        _
      $region10: #{tpu_custom_call.1} parent=5 // pred_check_branch
        %163 = sbr.rel (%p160) target = $region12
      $region11: #{tpu_custom_call.1} parent=5 // pred_region
        %s164 = ssub.s32 %s14, 1
        // Predicated region
        $region13: #{tpu_custom_call.1} parent=11 // pred_check
          %p165 = pneg %p103
        $region14: #{tpu_custom_call.1} parent=11 // pred_check_branch
          %167 = sbr.rel (%p165) target = $region16
        $region15: #{tpu_custom_call.1} parent=11 // pred_region
          %s169 = ssub.s32 512, 512
          %170 = vsyncadd [#allocation3], %s169
          %s171 = sshll.u32 [#allocation2], 4
          %s172 = int_to_ptr.vmem [resolvable:$true] %s171
          %177 = dma.hbm_to_vmem [thread:$0]  %s2, 512, %s172, [#allocation3], 128, 128, 8
        $region16: #{tpu_custom_call.1} parent=11 // pred_fallthru
          _
        // Predicated region
        $region17: #{tpu_custom_call.1} parent=11 // pred_check
          %p178 = pneg %p124
        $region18: #{tpu_custom_call.1} parent=11 // pred_check_branch
          %180 = sbr.rel (%p178) target = $region20
        $region19: #{tpu_custom_call.1} parent=11 // pred_region
          _
        $region20: #{tpu_custom_call.1} parent=11 // pred_fallthru
          _
      $region12: #{tpu_custom_call.1} parent=5 // pred_fallthru
        _
      %p181 = scmp.lt.s32.totalorder %s14, 2
      // Predicated region
      $region21: #{tpu_custom_call.1} parent=5 // pred_check
        %p182 = pneg %p181
      $region22: #{tpu_custom_call.1} parent=5 // pred_check_branch
        %184 = sbr.rel (%p182) target = $region24
      $region23: #{tpu_custom_call.1} parent=5 // pred_region
        // Predicated region
        $region25: #{tpu_custom_call.1} parent=23 // pred_check
          %p185 = pneg %p48
        $region26: #{tpu_custom_call.1} parent=23 // pred_check_branch
          %187 = sbr.rel (%p185) target = $region28
        $region27: #{tpu_custom_call.1} parent=23 // pred_region
          %p188 = scmp.lt.s32.totalorder %s21, 1
          %s189 = scalar_select %p188, %s21, 1
          %p190 = scmp.lt.s32.totalorder %s22, 0
          %s191 = scalar_select %p190, %s22, 0
          %s192 = sadd.s32 %s191, %s189
          %s193 = smul.addr %s192, 8
          %s194 = scalar_lea.vmem %s0, %s193
        $region28: #{tpu_custom_call.1} parent=23 // pred_fallthru
          _
        // Predicated region
        $region29: #{tpu_custom_call.1} parent=23 // pred_check
          %p195 = pneg %p76
        $region30: #{tpu_custom_call.1} parent=23 // pred_check_branch
          %197 = sbr.rel (%p195) target = $region32
        $region31: #{tpu_custom_call.1} parent=23 // pred_region
          %p198 = scmp.lt.s32.totalorder %s21, 1
          %s199 = scalar_select %p198, %s21, 1
          %p200 = scmp.lt.s32.totalorder %s22, 0
          %s201 = scalar_select %p200, %s22, 0
          %s202 = sadd.s32 %s201, %s199
          %s203 = smul.addr %s202, 8
          %s204 = scalar_lea.vmem %s1, %s203
        $region32: #{tpu_custom_call.1} parent=23 // pred_fallthru
          _
      $region24: #{tpu_custom_call.1} parent=5 // pred_fallthru
        _
      %p205 = scmp.le.s32.totalorder 1, %s14
      %p206 = scmp.lt.s32.totalorder %s14, 3
      %p207 = pnand %p205, %p206
      %p208 = pneg %p207
      // Predicated region
      $region33: #{tpu_custom_call.1} parent=5 // pred_check
        _
      $region34: #{tpu_custom_call.1} parent=5 // pred_check_branch
        %210 = sbr.rel (%p207) target = $region36
      $region35: #{tpu_custom_call.1} parent=5 // pred_region
        %s211 = ssub.s32 %s14, 1
        // Predicated region
        $region37: #{tpu_custom_call.1} parent=35 // pred_check
          %p212 = pneg %p103
        $region38: #{tpu_custom_call.1} parent=35 // pred_check_branch
          %214 = sbr.rel (%p212) target = $region40
        $region39: #{tpu_custom_call.1} parent=35 // pred_region
          %215 = dma.done [#allocation3], 512
        $region40: #{tpu_custom_call.1} parent=35 // pred_fallthru
          _
        %p216 = scmp.lt.s32.totalorder %s23, 1
        %s217 = scalar_select %p216, %s23, 1
        %p218 = scmp.lt.s32.totalorder %s24, 0
        %s219 = scalar_select %p218, %s24, 0
        %s220 = sadd.s32 %s219, %s217
        %s221 = smul.addr %s220, 8
        %s222 = scalar_lea.vmem %s0, %s221
        %p223 = pneg %p54
        %p224 = pneg %p51
        %p225 = scmp.lt.s32.totalorder %s23, 1
        %s226 = scalar_select %p225, %s23, 1
        %p227 = scmp.lt.s32.totalorder %s24, 0
        %s228 = scalar_select %p227, %s24, 0
        %s229 = sadd.s32 %s228, %s226
        %s230 = smul.addr %s229, 8
        %s231 = scalar_lea.vmem %s1, %s230
        %p232 = pneg %p82
        %p233 = pneg %p79
        %p234 = pneg %p103
        %p235 = pneg %p100
        %p236 = pneg %p124
        %p237 = pneg %p121
        %p238 = pneg %p150
        %p239 = pneg %p147
        %s240 = sand.u32 %s137, 1
        %s241 = scalar_lea.sflag [#allocation4], %s240
        %s242 = sand.u32 %s137, 1
        %s243 = scalar_lea.vmem [#allocation5], %s242
        %p244 = scmp.lt.s32.totalorder %s23, 1
        %s245 = scalar_select %p244, %s23, 1
        %p246 = scmp.lt.s32.totalorder %s24, 0
        %s247 = scalar_select %p246, %s24, 0
        %s248 = sadd.s32 %s247, %s245
        %s249 = smul.addr %s248, 8
        %s250 = scalar_lea.vmem %s0, %s249
        %p251 = scmp.lt.s32.totalorder %s23, 1
        %s252 = scalar_select %p251, %s23, 1
        %p253 = scmp.lt.s32.totalorder %s24, 0
        %s254 = scalar_select %p253, %s24, 0
        %s255 = sadd.s32 %s254, %s252
        %s256 = smul.addr %s255, 8
        %s257 = scalar_lea.vmem %s1, %s256
        %p258 = scmp.eq.s32.totalorder %s24, 0
        // Predicated region
        $region41: #{tpu_custom_call.1} parent=35 // pred_check
          %p259 = pneg %p258
        $region42: #{tpu_custom_call.1} parent=35 // pred_check_branch
          %261 = sbr.rel (%p259) target = $region44
        $region43: #{tpu_custom_call.1} parent=35 // pred_region
          %262 = vst [vmem:[%s243] sm:$0x1] 0.0
        $region44: #{tpu_custom_call.1} parent=35 // pred_fallthru
          _
        %v263 = vld [vmem:[%s250] sm:$0xff]
        %v264 = vld [vmem:[%s257] sm:$0xff]
        %v265 = vld [vmem:[#allocation2] sm:$0xff]
        %v266 = vld [vmem:[#allocation2 + $0x8] sm:$0xff]
        %v267 = vld [vmem:[#allocation2 + $0x10] sm:$0xff]
        %v268 = vld [vmem:[#allocation2 + $0x18] sm:$0xff]
        %v269 = vld [vmem:[%s3] sm:$0x1]
        %v271 = vlaneseq
        %v272 = vshrl.u32 %v271, 7
        %v273 = vsub.s32 0, %v272
        %v274 = vrot.slane %v269, %v273
        %vm276 = vcmask 261120
        %v278 = vsel %vm276, %v263, 0
        %280 = vmatprep.subr.mxu0 0.0
        %281 = vmatpush1.msra.mxu0 %v265
        %282 = vmatprep.subr.mxu0 0.0
        %283 = vmatpush1.msra.mxu0 %v266
        %284 = vmatprep.subr.mxu0 0.0
        %285 = vmatpush1.msra.mxu0 %v267
        %286 = vmatprep.subr.mxu0 0.0
        %287 = vmatpush1.msra.mxu0 %v268
        %288 = vmatprep.subr.mxu0 0.0
        %289 = vmatpush1.msra.mxu0 0.0
        %290 = vmatprep.subr.mxu0 0.0
        %291 = vmatpush1.msra.mxu0 0.0
        %292 = vmatprep.subr.mxu0 0.0
        %293 = vmatpush1.msra.mxu0 0.0
        %294 = vmatprep.subr.mxu0 0.0
        %295 = vmatpush1.msra.mxu0 0.0
        %296 = vmatprep.subr.mxu0 0.0
        %297 = vmatpush1.msra.mxu0 0.0
        %298 = vmatprep.subr.mxu0 0.0
        %299 = vmatpush1.msra.mxu0 0.0
        %300 = vmatprep.subr.mxu0 0.0
        %301 = vmatpush1.msra.mxu0 0.0
        %302 = vmatprep.subr.mxu0 0.0
        %303 = vmatpush1.msra.mxu0 0.0
        %304 = vmatprep.subr.mxu0 0.0
        %305 = vmatpush1.msra.mxu0 0.0
        %306 = vmatprep.subr.mxu0 0.0
        %307 = vmatpush1.msra.mxu0 0.0
        %308 = vmatprep.subr.mxu0 0.0
        %309 = vmatpush1.msra.mxu0 0.0
        %310 = vmatprep.subr.mxu0 0.0
        %311 = vmatpush1.msra.mxu0 0.0
        %312 = vmatprep.subr.mxu0 0.0
        %313 = vmatpush1.msra.mxu0 0.0
        %314 = vmatprep.subr.mxu0 0.0
        %315 = vmatpush1.msra.mxu0 0.0
        %316 = vmatprep.subr.mxu0 0.0
        %317 = vmatpush1.msra.mxu0 0.0
        %318 = vmatprep.subr.mxu0 0.0
        %319 = vmatpush1.msra.mxu0 0.0
        %320 = vmatprep.subr.mxu0 0.0
        %321 = vmatpush1.msra.mxu0 0.0
        %322 = vmatprep.subr.mxu0 0.0
        %323 = vmatpush1.msra.mxu0 0.0
        %324 = vmatprep.subr.mxu0 0.0
        %325 = vmatpush1.msra.mxu0 0.0
        %326 = vmatprep.subr.mxu0 0.0
        %327 = vmatpush1.msra.mxu0 0.0
        %328 = vmatprep.subr.mxu0 0.0
        %329 = vmatpush1.msra.mxu0 0.0
        %330 = vmatprep.subr.mxu0 0.0
        %331 = vmatpush1.msra.mxu0 0.0
        %332 = vmatprep.subr.mxu0 0.0
        %333 = vmatpush1.msra.mxu0 0.0
        %334 = vmatprep.subr.mxu0 0.0
        %335 = vmatpush1.msra.mxu0 0.0
        %336 = vmatprep.subr.mxu0 0.0
        %337 = vmatpush1.msra.mxu0 0.0
        %338 = vmatprep.subr.mxu0 0.0
        %339 = vmatpush1.msra.mxu0 0.0
        %340 = vmatprep.subr.mxu0 0.0
        %341 = vmatpush1.msra.mxu0 0.0
        %342 = vmatprep.subr.mxu0 0.0
        %343 = vmatpush1.msra.mxu0 0.0
        %344 = vmatprep.mubr.f32.mxu0 0.0
        %345 = vmatmul.mubr.f32.gmra.mrb[0].mxu0 %v278
        %v346 = vpop.f32.mrb[0].mxu0
        %v347 = vadd.f32 %v274, %v346
        %v348 = vpop.f32.mrb[0].mxu0
        %349 = vdwg.mxu0
        %351 = vrot.lane.b32.xlu0 %v264, 16
        %v352 = vpop.permute.xlu0 %351
        %v354 = vmul.f32 %v347, %v352
        %v355 = vmax.f32 %v354, 0.0
        %v356 = vmul.f32 %v355, %v352
        %v357 = vlaneseq
        %v358 = vand.u32 %v357, 127
        %vm359 = vcmp.eq.s32.totalorder %v358, 16
        %361 = vset.pattern.permute.xlu0 16
        %362 = vperm.xlu0 %361, %v356
        %v363 = vpop.permute.xlu0 %362
        %v365 = vmul.f32 %v347, %v363
        %367 = vset.pattern.permute.xlu0 16
        %368 = vperm.xlu0 %367, %v355
        %v369 = vpop.permute.xlu0 %368
        %v371 = vsel %vm359, %v369, %v365
        %v372 = vld [vmem:[%s243] sm:$0x1]
        %v373 = vrot.slane %v371, 4
        %v374 = vadd.f32 %v371, %v373
        %v375 = vrot.slane %v374, 2
        %v376 = vadd.f32 %v374, %v375
        %v377 = vrot.slane %v376, 1
        %v378 = vadd.f32 %v376, %v377
        %v379 = vadd.f32 %v372, %v378
        %380 = vst [vmem:[%s243] sm:$0x1] %v379
        // Predicated region
        $region45: #{tpu_custom_call.1} parent=35 // pred_check
          %p381 = pneg %p258
        $region46: #{tpu_custom_call.1} parent=35 // pred_check_branch
          %383 = sbr.rel (%p381) target = $region48
        $region47: #{tpu_custom_call.1} parent=35 // pred_region
          %v384 = vld [vmem:[%s243] sm:$0x1]
          %v385 = vadd.f32 %v384, 1e-05
          %v386 = vadd.f32 %v384, 1e-08
          %388 = vset.pattern.permute.xlu0 16
          %389 = vperm.xlu0 %388, %v385
          %v390 = vpop.permute.xlu0 %389
          %v392 = vlaneseq
          %v393 = vshrl.u32 %v392, 7
          %v394 = vsub.s32 0, %v393
          %v395 = vrot.slane %v390, %v394
          %v396 = vrcp.pop %v395
          %v397 = vmul.f32 %v386, %v396
          %v398 = vsel %vm359, %v395, %v397
          %399 = vst [vmem:[%s243] sm:$0x1] %v398
        $region48: #{tpu_custom_call.1} parent=35 // pred_fallthru
          _
        %s400 = sand.u32 %s137, 1
        %s401 = scalar_lea.sflag [#allocation4], %s400
        %s402 = sand.u32 %s137, 1
        %s403 = scalar_lea.vmem [#allocation5], %s402
        // Predicated region
        $region49: #{tpu_custom_call.1} parent=35 // pred_check
          %p404 = pneg %p147
        $region50: #{tpu_custom_call.1} parent=35 // pred_check_branch
          %406 = sbr.rel (%p404) target = $region52
        $region51: #{tpu_custom_call.1} parent=35 // pred_region
          %s408 = ssub.s32 16, 16
          %409 = vsyncadd %s401, %s408
          %s410 = smul.addr %s23, 16
          %s411 = scalar_lea.hbm %s4, %s410
          %s413 = sshll.u32 %s403, 4
          %s414 = int_to_ptr.vmem [resolvable:$true] %s413
          %416 = dma.vmem_to_hbm [thread:$0]  %s414, 16, %s411, %s401
        $region52: #{tpu_custom_call.1} parent=35 // pred_fallthru
          _
      $region36: #{tpu_custom_call.1} parent=5 // pred_fallthru
        _
      %p417 = scmp.le.s32.totalorder 2, %s14
      // Predicated region
      $region53: #{tpu_custom_call.1} parent=5 // pred_check
        %p418 = pneg %p417
      $region54: #{tpu_custom_call.1} parent=5 // pred_check_branch
        %420 = sbr.rel (%p418) target = $region56
      $region55: #{tpu_custom_call.1} parent=5 // pred_region
        %s421 = ssub.s32 %s14, 2
        // Predicated region
        $region57: #{tpu_custom_call.1} parent=55 // pred_check
          %p422 = pneg %p153
        $region58: #{tpu_custom_call.1} parent=55 // pred_check_branch
          %424 = sbr.rel (%p422) target = $region60
        $region59: #{tpu_custom_call.1} parent=55 // pred_region
          %s425 = sand.u32 %s138, 1
          %s426 = scalar_lea.sflag [#allocation4], %s425
          %s427 = sand.u32 %s138, 1
          %s428 = scalar_lea.vmem [#allocation5], %s427
          %429 = dma.done %s426, 16
        $region60: #{tpu_custom_call.1} parent=55 // pred_fallthru
          _
      $region56: #{tpu_custom_call.1} parent=5 // pred_fallthru
        _
    $region6: #{tpu_custom_call.1} parent=1 // loop_footer
      %s18 = sadd.s32 1, %s14
    $region7: #{tpu_custom_call.1} parent=1 // loop_footer_branch
      %13 = sbr.rel target = $region3
    $region8: #{tpu_custom_call.1} parent=1 // loop_exit
      _
    %430 = vsyncpa [#allocation3], 1
    %s431 = scalar_lea.sflag [#allocation3], 1
    %432 = vsyncpa %s431, 1
    %433 = vsyncpa [#allocation4], 1
    %s434 = scalar_lea.sflag [#allocation4], 1
    %435 = vsyncpa %s434, 1

</llo_original>
